<compile_context>
chip_gen: v7x
topology: tpu7x:2x2x1
jax: 0.10.0
libtpu: 0.0.40
codegen_flags: <defaults>
</compile_context>

<pallas_src>
import functools

import jax
import jax.numpy as jnp
from jax.experimental import pallas as pl
from jax.experimental.pallas import tpu as pltpu


def _round_up(x, m):
    return ((x + m - 1) // m) * m


# ---------------------------------------------------------------------------
# Fused kernel.
#   ion2d   : (B*T, F_ion)  ion features, rows grouped by batch (row = b*T + t)
#   node2d  : (B*N, F_node) node features, rows grouped by batch (row = b*N + n)
#   w_ion   : (F_ion, Dp)   ionCNN projection, D zero-padded to Dp (=128)
#   b_ion   : (1, Dp)       ionCNN bias (zero-padded)
#   wg_fold : (F_node, Cp)  (wg / N) @ w1   -- graph path folded into the head
#   w2_fold : (Dp, Cp)      w2 * self.weight / T -- ion path head weight
#   ws      : (F_node, Sp)  siteprediction projection, S zero-padded to Sp
# Outputs:
#   logits  : (B, Cp)       lane-dense padded logits
#   site    : (B*N, Sp)     lane-dense padded site predictions
# ---------------------------------------------------------------------------
def _fused_kernel(B, T, N,
                  ion_ref, node_ref, w_ion_ref, b_ion_ref,
                  wg_fold_ref, w2_fold_ref, ws_ref,
                  logits_ref, site_ref):
    # Ion path: per-peak dense projection + bias + ReLU ...
    h = jnp.dot(ion_ref[...], w_ion_ref[...],
                preferred_element_type=jnp.float32)              # (B*T, Dp)
    h = jnp.maximum(h + b_ion_ref[...], 0.0)
    Dp = h.shape[-1]
    # ... then per-batch sum over the T peaks via a free leading-dim reshape
    # (T is a multiple of 8 sublanes) + sublane reduce; 1/T folded into w2_fold.
    ion_sum = jnp.sum(h.reshape(B, T, Dp), axis=1)               # (B, Dp)

    # Graph path: sum over nodes (1/N and wg@w1 folded into wg_fold).
    node2d = node_ref[...]                                       # (B*N, F_node)
    F_node = node2d.shape[-1]
    g = jnp.sum(node2d.reshape(B, N, F_node), axis=1)            # (B, F_node)

    # Head: two small dots + one vreg add (no concat, no separate graph matmul).
    logits_ref[...] = (
        jnp.dot(g, wg_fold_ref[...], preferred_element_type=jnp.float32)
        + jnp.dot(ion_sum, w2_fold_ref[...],
                  preferred_element_type=jnp.float32))           # (B, Cp)

    # Site prediction: fused second output, lane-dense (unmasked vst).
    site_ref[...] = jnp.dot(node2d, ws_ref[...],
                            preferred_element_type=jnp.float32)  # (B*N, Sp)


# ---------------------------------------------------------------------------
# One-time parameter preparation (hoisted out of the per-step path).
# ---------------------------------------------------------------------------
def prepare_params(params, *, T, N):
    f32 = jnp.float32
    F_ion, D = params["w_ion"].shape
    F_node = params["wg"].shape[0]
    C = params["w1"].shape[1]
    S = params["ws"].shape[1]
    Dp = _round_up(D, 128)
    Cp = _round_up(C, 128)
    Sp = _round_up(S, 128)
    scale = params["scale"][0, 0]

    w_ion_p = jnp.zeros((F_ion, Dp), f32).at[:, :D].set(params["w_ion"])
    b_ion_p = jnp.zeros((1, Dp), f32).at[:, :D].set(params["b_ion"])
    # graph path:  mean_n(node) @ wg @ w1  ==  sum_n(node) @ ((wg / N) @ w1)
    wg_fold = jnp.zeros((F_node, Cp), f32).at[:, :C].set(
        (params["wg"] / N) @ params["w1"])
    # ion path:    (mean_t(h) * scale) @ w2  ==  sum_t(h) @ (w2 * scale / T)
    w2_fold = jnp.zeros((Dp, Cp), f32).at[:D, :C].set(
        params["w2"] * (scale / T))
    ws_p = jnp.zeros((F_node, Sp), f32).at[:, :S].set(params["ws"])

    prepped = {"w_ion": w_ion_p, "b_ion": b_ion_p,
               "wg_fold": wg_fold, "w2_fold": w2_fold, "ws": ws_p}
    meta = {"C": C, "S": S}
    return prepped, meta


# ---------------------------------------------------------------------------
# Per-step forward: free reshapes + ONE pallas_call + output slices.
# ---------------------------------------------------------------------------
@functools.partial(jax.jit, static_argnames=("C", "S"))
def graphormer_ion_cnn_forward(prepped, ion_feats, node_feats, *, C, S):
    B, T, F_ion = ion_feats.shape
    _, N, F_node = node_feats.shape
    Dp = prepped["w_ion"].shape[1]
    Cp = prepped["wg_fold"].shape[1]
    Sp = prepped["ws"].shape[1]
    f32 = jnp.float32

    ion2d = ion_feats.reshape(B * T, F_ion)      # free leading-dim layout ops
    node2d = node_feats.reshape(B * N, F_node)

    kernel = functools.partial(_fused_kernel, B, T, N)
    vmem = pl.BlockSpec(memory_space=pltpu.MemorySpace.VMEM)

    flops = 2 * (B * T * F_ion * Dp + B * F_node * Cp + B * Dp * Cp
                 + B * N * F_node * Sp)
    bytes_accessed = 4 * (ion2d.size + node2d.size
                          + sum(int(v.size) for v in prepped.values())
                          + B * Cp + B * N * Sp)

    logits_p, site_p = pl.pallas_call(
        kernel,
        out_shape=(jax.ShapeDtypeStruct((B, Cp), f32),
                   jax.ShapeDtypeStruct((B * N, Sp), f32)),
        in_specs=[vmem] * 7,
        out_specs=(vmem, vmem),
        cost_estimate=pl.CostEstimate(flops=flops, transcendentals=0,
                                      bytes_accessed=bytes_accessed),
    )(ion2d, node2d, prepped["w_ion"], prepped["b_ion"],
      prepped["wg_fold"], prepped["w2_fold"], prepped["ws"])

    logits = logits_p[:, :C]                                 # (B, C)
    siteprediction = site_p[:, :S].reshape(B, N, S)          # (B, N, S)
    return logits, siteprediction


if __name__ == "__main__":
    B, T, F_ion = 8, 16, 8          # batch, ion peaks, ion feature dim
    N, F_node = 8, 8                # nodes per graph, node feature dim
    D = 32                          # encoder_embed_dim
    C = 16                          # num_classes
    S = 4                           # site-prediction classes

    key = jax.random.PRNGKey(0)
    ks = jax.random.split(key, 8)

    ion_feats = jax.random.normal(ks[0], (B, T, F_ion), jnp.float32)
    node_feats = jax.random.normal(ks[1], (B, N, F_node), jnp.float32)

    # Deterministic parameter init (synthetic; shapes follow __init__ semantics).
    # TODO(synk): the real `ionCNN` class and the injected `graph_embedding`
    # module are not defined in the reference file; the ion path here is a
    # representative per-peak dense + ReLU + mean-pool, and siteprediction is a
    # synthetic per-node linear stand-in.
    w_embed_out = jax.random.normal(ks[2], (C, 2 * D), jnp.float32) * 0.05  # Linear(2D, C, bias=False)
    params = {
        "w_ion": jax.random.normal(ks[3], (F_ion, D), jnp.float32) * 0.1,
        "b_ion": jax.random.normal(ks[4], (1, D), jnp.float32) * 0.1,
        "wg":    jax.random.normal(ks[5], (F_node, D), jnp.float32) * 0.1,
        "ws":    jax.random.normal(ks[6], (F_node, S), jnp.float32) * 0.1,
        "scale": jnp.full((1, 1), 0.5, jnp.float32),       # self.weight (scalar Parameter)
        "w1":    jnp.transpose(w_embed_out[:, :D]),        # (D, C)
        "w2":    jnp.transpose(w_embed_out[:, D:]),        # (D, C)
    }

    # One-time weight folding / padding (hoisted out of the per-step path).
    prepped, meta = prepare_params(params, T=T, N=N)
    jax.block_until_ready(prepped)

    logits, siteprediction = graphormer_ion_cnn_forward(
        prepped, ion_feats, node_feats, C=meta["C"], S=meta["S"])
    jax.block_until_ready((logits, siteprediction))

    # Pure-JAX reference check of the Pallas-implemented path.
    h = jnp.maximum(jnp.einsum("btf,fd->btd", ion_feats, params["w_ion"])
                    + params["b_ion"][None], 0.0)
    ion_ref = jnp.mean(h, axis=1)
    graph_embed_ref = jnp.mean(node_feats, axis=1) @ params["wg"]
    combined = jnp.concatenate([graph_embed_ref,
                                ion_ref * params["scale"][0, 0]], axis=1)
    logits_ref = combined @ w_embed_out.T
    site_ref = jnp.einsum("bnf,fs->bns", node_feats, params["ws"])

    assert logits.shape == (B, C)
    assert siteprediction.shape == (B, N, S)
    assert jnp.allclose(logits, logits_ref, atol=1e-4, rtol=1e-4)
    assert jnp.allclose(siteprediction, site_ref, atol=1e-4, rtol=1e-4)

    print("KERNEL_OK")
</pallas_src>

<mosaic_0001>
module attributes {stable_mosaic.version = 11 : i64} {
  func.func @_fused_kernel(%arg0: memref<128x8xf32, #tpu.memory_space<vmem>>, %arg1: memref<64x8xf32, #tpu.memory_space<vmem>>, %arg2: memref<8x128xf32, #tpu.memory_space<vmem>>, %arg3: memref<1x128xf32, #tpu.memory_space<vmem>>, %arg4: memref<8x128xf32, #tpu.memory_space<vmem>>, %arg5: memref<128x128xf32, #tpu.memory_space<vmem>>, %arg6: memref<8x128xf32, #tpu.memory_space<vmem>>, %arg7: memref<8x128xf32, #tpu.memory_space<vmem>>, %arg8: memref<64x128xf32, #tpu.memory_space<vmem>>) attributes {dimension_semantics = [], scalar_prefetch = 0 : i64, scratch_operands = 0 : i64, tpu.core_type = #tpu.core_type<tc>} {
    %c0 = arith.constant 0 : index
    %c0_0 = arith.constant 0 : index
    %0 = vector.load %arg0[%c0, %c0_0] : memref<128x8xf32, #tpu.memory_space<vmem>>, vector<128x8xf32>
    %c0_1 = arith.constant 0 : index
    %c0_2 = arith.constant 0 : index
    %1 = vector.load %arg2[%c0_1, %c0_2] : memref<8x128xf32, #tpu.memory_space<vmem>>, vector<8x128xf32>
    %cst = arith.constant dense<0.000000e+00> : vector<128x128xf32>
    %2 = tpu.matmul %0, %1, %cst {dimension_numbers = #tpu.dot_dimension_numbers<[1], [0], [0], [1], [0, 0, 1, 1], [], []>} : vector<128x8xf32>, vector<8x128xf32>, vector<128x128xf32> -> vector<128x128xf32>
    %c0_3 = arith.constant 0 : index
    %c0_4 = arith.constant 0 : index
    %3 = vector.load %arg3[%c0_3, %c0_4] : memref<1x128xf32, #tpu.memory_space<vmem>>, vector<1x128xf32>
    %4 = vector.broadcast %3 : vector<1x128xf32> to vector<128x128xf32>
    %5 = arith.addf %2, %4 : vector<128x128xf32>
    %cst_5 = arith.constant 0.000000e+00 : f32
    %6 = vector.broadcast %cst_5 : f32 to vector<128x128xf32>
    %7 = arith.maximumf %5, %6 : vector<128x128xf32>
    %8 = vector.shape_cast %7 : vector<128x128xf32> to vector<8x16x128xf32>
    %cst_6 = arith.constant dense<0.000000e+00> : vector<8x128xf32>
    %9 = vector.multi_reduction <add>, %8, %cst_6 [1] : vector<8x16x128xf32> to vector<8x128xf32>
    %c0_7 = arith.constant 0 : index
    %c0_8 = arith.constant 0 : index
    %10 = vector.load %arg1[%c0_7, %c0_8] : memref<64x8xf32, #tpu.memory_space<vmem>>, vector<64x8xf32>
    %11 = vector.shape_cast %10 : vector<64x8xf32> to vector<8x8x8xf32>
    %cst_9 = arith.constant dense<0.000000e+00> : vector<8x8xf32>
    %12 = vector.multi_reduction <add>, %11, %cst_9 [1] : vector<8x8x8xf32> to vector<8x8xf32>
    %c0_10 = arith.constant 0 : index
    %c0_11 = arith.constant 0 : index
    %13 = vector.load %arg4[%c0_10, %c0_11] : memref<8x128xf32, #tpu.memory_space<vmem>>, vector<8x128xf32>
    %cst_12 = arith.constant dense<0.000000e+00> : vector<8x128xf32>
    %14 = tpu.matmul %12, %13, %cst_12 {dimension_numbers = #tpu.dot_dimension_numbers<[1], [0], [0], [1], [0, 0, 1, 1], [], []>} : vector<8x8xf32>, vector<8x128xf32>, vector<8x128xf32> -> vector<8x128xf32>
    %c0_13 = arith.constant 0 : index
    %c0_14 = arith.constant 0 : index
    %15 = vector.load %arg5[%c0_13, %c0_14] : memref<128x128xf32, #tpu.memory_space<vmem>>, vector<128x128xf32>
    %cst_15 = arith.constant dense<0.000000e+00> : vector<8x128xf32>
    %16 = tpu.matmul %9, %15, %cst_15 {dimension_numbers = #tpu.dot_dimension_numbers<[1], [0], [0], [1], [0, 0, 1, 1], [], []>} : vector<8x128xf32>, vector<128x128xf32>, vector<8x128xf32> -> vector<8x128xf32>
    %17 = arith.addf %14, %16 : vector<8x128xf32>
    %c0_16 = arith.constant 0 : index
    %c0_17 = arith.constant 0 : index
    %18 = vector.load %arg7[%c0_16, %c0_17] : memref<8x128xf32, #tpu.memory_space<vmem>>, vector<8x128xf32>
    tpu.vector_store %arg7[%c0_16, %c0_17], %17 {strides = array<i32>} : memref<8x128xf32, #tpu.memory_space<vmem>>, vector<8x128xf32>,
    %c0_18 = arith.constant 0 : index
    %c0_19 = arith.constant 0 : index
    %19 = vector.load %arg6[%c0_18, %c0_19] : memref<8x128xf32, #tpu.memory_space<vmem>>, vector<8x128xf32>
    %cst_20 = arith.constant dense<0.000000e+00> : vector<64x128xf32>
    %20 = tpu.matmul %10, %19, %cst_20 {dimension_numbers = #tpu.dot_dimension_numbers<[1], [0], [0], [1], [0, 0, 1, 1], [], []>} : vector<64x8xf32>, vector<8x128xf32>, vector<64x128xf32> -> vector<64x128xf32>
    %c0_21 = arith.constant 0 : index
    %c0_22 = arith.constant 0 : index
    %21 = vector.load %arg8[%c0_21, %c0_22] : memref<64x128xf32, #tpu.memory_space<vmem>>, vector<64x128xf32>
    tpu.vector_store %arg8[%c0_21, %c0_22], %20 {strides = array<i32>} : memref<64x128xf32, #tpu.memory_space<vmem>>, vector<64x128xf32>,
    return
  }
}

</mosaic_0001>

<llo_original>
// kernel: graphormer_ion_cnn_forward.1
$region0: #{graphormer_ion_cnn_forward.1}
  #allocation0 [shape = 'u32[]', space=smem, size = 0x4, offset = 0x4, fixed_abs, tag = 'smem constant byte address 0x4 - core index']
  #allocation1 [shape = 'u32[144,128]{1,0:T(1,128)}', space=vmem, size = 0x12000, scoped, tag = 'internal scratch']
  %s0 = inlined_call_operand.vmem [shape: f32[128,8], index: 0, kind: input, shape index: {}]
  %s1 = inlined_call_operand.vmem [shape: f32[64,8], index: 1, kind: input, shape index: {}]
  %s2 = inlined_call_operand.vmem [shape: f32[8,128], index: 2, kind: input, shape index: {}]
  %s3 = inlined_call_operand.vmem [shape: f32[1,128], index: 3, kind: input, shape index: {}]
  %s4 = inlined_call_operand.vmem [shape: f32[8,128], index: 4, kind: input, shape index: {}]
  %s5 = inlined_call_operand.vmem [shape: f32[128,128], index: 5, kind: input, shape index: {}]
  %s6 = inlined_call_operand.hbm [shape: f32[8,128], index: 6, kind: input, shape index: {}]
  %s7 = inlined_call_operand.hbm [shape: f32[8,128], index: 7, kind: output, shape index: {0}]
  %s8 = inlined_call_operand.vmem [shape: f32[64,128], index: 8, kind: output, shape index: {1}]
  %9 = xla_tuple %s7, %s8
  %s10 = sld [smem:[#allocation0]]
  $region50: #{graphormer_ion_cnn_forward.1} parent=0
    _
  %s12 = ssub.s32 1, %s10
  %s13 = scalar_select 0, %s12, %s10
  $region1: #{graphormer_ion_cnn_forward.1} parent=0
    #allocation2 [shape = 'u8[4096]{0}', space=vmem, size = 0x1000, scoped, tag = 'input window, operand 6, single buffered']
    #allocation3 [shape = 's32[1]{0}', space=sflag, size = 0x4, scoped, tag = 'scoped memory for graphormer_ion_cnn_forward.1']
    #allocation4 [shape = 's32[1]{0}', space=sflag, size = 0x4, scoped, tag = 'scoped memory for graphormer_ion_cnn_forward.1']
    #allocation5 [shape = 'u8[4096]{0}', space=vmem, size = 0x1000, scoped, tag = 'output window, operand 0, single buffered']
    %14 = vsyncpa [#allocation3], 0
    %15 = vsyncpa [#allocation4], 0
    // Predicated region
    $region2: #{graphormer_ion_cnn_forward.1} parent=1 // pred_check
      _
    $region3: #{graphormer_ion_cnn_forward.1} parent=1 // pred_check_branch
      %17 = sbr.rel (0) target = $region5
    $region4: #{graphormer_ion_cnn_forward.1} parent=1 // pred_region
      _
    $region5: #{graphormer_ion_cnn_forward.1} parent=1 // pred_fallthru
      _
    // Predicated region
    $region6: #{graphormer_ion_cnn_forward.1} parent=1 // pred_check
      _
    $region7: #{graphormer_ion_cnn_forward.1} parent=1 // pred_check_branch
      %19 = sbr.rel (0) target = $region9
    $region8: #{graphormer_ion_cnn_forward.1} parent=1 // pred_region
      _
    $region9: #{graphormer_ion_cnn_forward.1} parent=1 // pred_fallthru
      _
    // Predicated region
    $region10: #{graphormer_ion_cnn_forward.1} parent=1 // pred_check
      _
    $region11: #{graphormer_ion_cnn_forward.1} parent=1 // pred_check_branch
      %21 = sbr.rel (0) target = $region13
    $region12: #{graphormer_ion_cnn_forward.1} parent=1 // pred_region
      _
    $region13: #{graphormer_ion_cnn_forward.1} parent=1 // pred_fallthru
      _
    // Predicated region
    $region14: #{graphormer_ion_cnn_forward.1} parent=1 // pred_check
      _
    $region15: #{graphormer_ion_cnn_forward.1} parent=1 // pred_check_branch
      %23 = sbr.rel (0) target = $region17
    $region16: #{graphormer_ion_cnn_forward.1} parent=1 // pred_region
      _
    $region17: #{graphormer_ion_cnn_forward.1} parent=1 // pred_fallthru
      _
    // Predicated region
    $region18: #{graphormer_ion_cnn_forward.1} parent=1 // pred_check
      _
    $region19: #{graphormer_ion_cnn_forward.1} parent=1 // pred_check_branch
      %25 = sbr.rel (0) target = $region21
    $region20: #{graphormer_ion_cnn_forward.1} parent=1 // pred_region
      _
    $region21: #{graphormer_ion_cnn_forward.1} parent=1 // pred_fallthru
      _
    // Predicated region
    $region22: #{graphormer_ion_cnn_forward.1} parent=1 // pred_check
      _
    $region23: #{graphormer_ion_cnn_forward.1} parent=1 // pred_check_branch
      %27 = sbr.rel (0) target = $region25
    $region24: #{graphormer_ion_cnn_forward.1} parent=1 // pred_region
      _
    $region25: #{graphormer_ion_cnn_forward.1} parent=1 // pred_fallthru
      _
    // Predicated region
    $region26: #{graphormer_ion_cnn_forward.1} parent=1 // pred_check
      _
    $region27: #{graphormer_ion_cnn_forward.1} parent=1 // pred_check_branch
      %29 = sbr.rel (0) target = $region29
    $region28: #{graphormer_ion_cnn_forward.1} parent=1 // pred_region
      %s31 = ssub.s32 128, 128
      %32 = vsyncadd [#allocation3], %s31
      %s34 = sshll.u32 [#allocation2], 4
      %s35 = int_to_ptr.vmem [resolvable:$true] %s34
      %37 = dma.hbm_to_vmem [thread:$0]  %s6, 128, %s35, [#allocation3]
    $region29: #{graphormer_ion_cnn_forward.1} parent=1 // pred_fallthru
      _
    // Predicated region
    $region30: #{graphormer_ion_cnn_forward.1} parent=1 // pred_check
      _
    $region31: #{graphormer_ion_cnn_forward.1} parent=1 // pred_check_branch
      %39 = sbr.rel (0) target = $region33
    $region32: #{graphormer_ion_cnn_forward.1} parent=1 // pred_region
      %40 = dma.done [#allocation3], 128
    $region33: #{graphormer_ion_cnn_forward.1} parent=1 // pred_fallthru
      _
    %v41 = vld [vmem:[%s0] sm:$0xff]
    %v42 = vld [vmem:[%s0 + $0x8] sm:$0xff]
    %v43 = vld [vmem:[%s0 + $0x10] sm:$0xff]
    %v44 = vld [vmem:[%s0 + $0x18] sm:$0xff]
    %v45 = vld [vmem:[%s0 + $0x20] sm:$0xff]
    %v46 = vld [vmem:[%s0 + $0x28] sm:$0xff]
    %v47 = vld [vmem:[%s0 + $0x30] sm:$0xff]
    %v48 = vld [vmem:[%s0 + $0x38] sm:$0xff]
    %v49 = vld [vmem:[%s0 + $0x40] sm:$0xff]
    %v50 = vld [vmem:[%s0 + $0x48] sm:$0xff]
    %v51 = vld [vmem:[%s0 + $0x50] sm:$0xff]
    %v52 = vld [vmem:[%s0 + $0x58] sm:$0xff]
    %v53 = vld [vmem:[%s0 + $0x60] sm:$0xff]
    %v54 = vld [vmem:[%s0 + $0x68] sm:$0xff]
    %v55 = vld [vmem:[%s0 + $0x70] sm:$0xff]
    %v56 = vld [vmem:[%s0 + $0x78] sm:$0xff]
    %v57 = vld [vmem:[%s2] sm:$0xff]
    %v58 = vld [vmem:[%s3] sm:$0x1]
    %v60 = vlaneseq
    %v61 = vshrl.u32 %v60, 7
    %v62 = vsub.s32 0, %v61
    %v63 = vrot.slane %v58, %v62
    %vm65 = vcmask 64512
    %v67 = vsel %vm65, %v41, 0
    %v70 = vsel %vm65, %v42, 0
    %v73 = vsel %vm65, %v43, 0
    %v76 = vsel %vm65, %v44, 0
    %v79 = vsel %vm65, %v45, 0
    %v82 = vsel %vm65, %v46, 0
    %v85 = vsel %vm65, %v47, 0
    %v88 = vsel %vm65, %v48, 0
    %v91 = vsel %vm65, %v49, 0
    %v94 = vsel %vm65, %v50, 0
    %v97 = vsel %vm65, %v51, 0
    %v100 = vsel %vm65, %v52, 0
    %v103 = vsel %vm65, %v53, 0
    %v106 = vsel %vm65, %v54, 0
    %v109 = vsel %vm65, %v55, 0
    %v112 = vsel %vm65, %v56, 0
    %114 = vmatprep.subr.mxu0 0.0
    %115 = vmatpush1.msra.mxu0 %v57
    %116 = vmatprep.subr.mxu0 0.0
    %117 = vmatpush1.msra.mxu0 0.0
    %118 = vmatprep.subr.mxu0 0.0
    %119 = vmatpush1.msra.mxu0 0.0
    %120 = vmatprep.subr.mxu0 0.0
    %121 = vmatpush1.msra.mxu0 0.0
    %122 = vmatprep.subr.mxu0 0.0
    %123 = vmatpush1.msra.mxu0 0.0
    %124 = vmatprep.subr.mxu0 0.0
    %125 = vmatpush1.msra.mxu0 0.0
    %126 = vmatprep.subr.mxu0 0.0
    %127 = vmatpush1.msra.mxu0 0.0
    %128 = vmatprep.subr.mxu0 0.0
    %129 = vmatpush1.msra.mxu0 0.0
    %130 = vmatprep.subr.mxu0 0.0
    %131 = vmatpush1.msra.mxu0 0.0
    %132 = vmatprep.subr.mxu0 0.0
    %133 = vmatpush1.msra.mxu0 0.0
    %134 = vmatprep.subr.mxu0 0.0
    %135 = vmatpush1.msra.mxu0 0.0
    %136 = vmatprep.subr.mxu0 0.0
    %137 = vmatpush1.msra.mxu0 0.0
    %138 = vmatprep.subr.mxu0 0.0
    %139 = vmatpush1.msra.mxu0 0.0
    %140 = vmatprep.subr.mxu0 0.0
    %141 = vmatpush1.msra.mxu0 0.0
    %142 = vmatprep.subr.mxu0 0.0
    %143 = vmatpush1.msra.mxu0 0.0
    %144 = vmatprep.subr.mxu0 0.0
    %145 = vmatpush1.msra.mxu0 0.0
    %146 = vmatprep.subr.mxu0 0.0
    %147 = vmatpush1.msra.mxu0 0.0
    %148 = vmatprep.subr.mxu0 0.0
    %149 = vmatpush1.msra.mxu0 0.0
    %150 = vmatprep.subr.mxu0 0.0
    %151 = vmatpush1.msra.mxu0 0.0
    %152 = vmatprep.subr.mxu0 0.0
    %153 = vmatpush1.msra.mxu0 0.0
    %154 = vmatprep.subr.mxu0 0.0
    %155 = vmatpush1.msra.mxu0 0.0
    %156 = vmatprep.subr.mxu0 0.0
    %157 = vmatpush1.msra.mxu0 0.0
    %158 = vmatprep.subr.mxu0 0.0
    %159 = vmatpush1.msra.mxu0 0.0
    %160 = vmatprep.subr.mxu0 0.0
    %161 = vmatpush1.msra.mxu0 0.0
    %162 = vmatprep.subr.mxu0 0.0
    %163 = vmatpush1.msra.mxu0 0.0
    %164 = vmatprep.subr.mxu0 0.0
    %165 = vmatpush1.msra.mxu0 0.0
    %166 = vmatprep.subr.mxu0 0.0
    %167 = vmatpush1.msra.mxu0 0.0
    %168 = vmatprep.subr.mxu0 0.0
    %169 = vmatpush1.msra.mxu0 0.0
    %170 = vmatprep.subr.mxu0 0.0
    %171 = vmatpush1.msra.mxu0 0.0
    %172 = vmatprep.subr.mxu0 0.0
    %173 = vmatpush1.msra.mxu0 0.0
    %174 = vmatprep.subr.mxu0 0.0
    %175 = vmatpush1.msra.mxu0 0.0
    %176 = vmatprep.subr.mxu0 0.0
    %177 = vmatpush1.msra.mxu0 0.0
    %178 = vmatprep.mubr.f32.mxu0 0.0
    %179 = vmatmul.mubr.f32.gmra.mrb[0].mxu0 %v67
    %v180 = vpop.f32.mrb[0].mxu0
    %v181 = vadd.f32 %v63, %v180
    %v182 = vpop.f32.mrb[0].mxu0
    %183 = vmatprep.mubr.f32.mxu0 0.0
    %184 = vmatmul.mubr.f32.gmra.mrb[0].mxu0 %v70
    %v185 = vpop.f32.mrb[0].mxu0
    %v186 = vadd.f32 %v63, %v185
    %v187 = vpop.f32.mrb[0].mxu0
    %188 = vmatprep.mubr.f32.mxu0 0.0
    %189 = vmatmul.mubr.f32.gmra.mrb[0].mxu0 %v73
    %v190 = vpop.f32.mrb[0].mxu0
    %v191 = vadd.f32 %v63, %v190
    %v192 = vpop.f32.mrb[0].mxu0
    %193 = vmatprep.mubr.f32.mxu0 0.0
    %194 = vmatmul.mubr.f32.gmra.mrb[0].mxu0 %v76
    %v195 = vpop.f32.mrb[0].mxu0
    %v196 = vadd.f32 %v63, %v195
    %v197 = vpop.f32.mrb[0].mxu0
    %198 = vmatprep.mubr.f32.mxu0 0.0
    %199 = vmatmul.mubr.f32.gmra.mrb[0].mxu0 %v79
    %v200 = vpop.f32.mrb[0].mxu0
    %v201 = vadd.f32 %v63, %v200
    %v202 = vpop.f32.mrb[0].mxu0
    %203 = vmatprep.mubr.f32.mxu0 0.0
    %204 = vmatmul.mubr.f32.gmra.mrb[0].mxu0 %v82
    %v205 = vpop.f32.mrb[0].mxu0
    %v206 = vadd.f32 %v63, %v205
    %v207 = vpop.f32.mrb[0].mxu0
    %208 = vmatprep.mubr.f32.mxu0 0.0
    %209 = vmatmul.mubr.f32.gmra.mrb[0].mxu0 %v85
    %v210 = vpop.f32.mrb[0].mxu0
    %v211 = vadd.f32 %v63, %v210
    %v212 = vpop.f32.mrb[0].mxu0
    %213 = vmatprep.mubr.f32.mxu0 0.0
    %214 = vmatmul.mubr.f32.gmra.mrb[0].mxu0 %v88
    %v215 = vpop.f32.mrb[0].mxu0
    %v216 = vadd.f32 %v63, %v215
    %v217 = vpop.f32.mrb[0].mxu0
    %218 = vmatprep.mubr.f32.mxu0 0.0
    %219 = vmatmul.mubr.f32.gmra.mrb[0].mxu0 %v91
    %v220 = vpop.f32.mrb[0].mxu0
    %v221 = vadd.f32 %v63, %v220
    %v222 = vpop.f32.mrb[0].mxu0
    %223 = vmatprep.mubr.f32.mxu0 0.0
    %224 = vmatmul.mubr.f32.gmra.mrb[0].mxu0 %v94
    %v225 = vpop.f32.mrb[0].mxu0
    %v226 = vadd.f32 %v63, %v225
    %v227 = vpop.f32.mrb[0].mxu0
    %228 = vmatprep.mubr.f32.mxu0 0.0
    %229 = vmatmul.mubr.f32.gmra.mrb[0].mxu0 %v97
    %v230 = vpop.f32.mrb[0].mxu0
    %v231 = vadd.f32 %v63, %v230
    %v232 = vpop.f32.mrb[0].mxu0
    %233 = vmatprep.mubr.f32.mxu0 0.0
    %234 = vmatmul.mubr.f32.gmra.mrb[0].mxu0 %v100
    %v235 = vpop.f32.mrb[0].mxu0
    %v236 = vadd.f32 %v63, %v235
    %v237 = vpop.f32.mrb[0].mxu0
    %238 = vmatprep.mubr.f32.mxu0 0.0
    %239 = vmatmul.mubr.f32.gmra.mrb[0].mxu0 %v103
    %v240 = vpop.f32.mrb[0].mxu0
    %v241 = vadd.f32 %v63, %v240
    %v242 = vpop.f32.mrb[0].mxu0
    %243 = vmatprep.mubr.f32.mxu0 0.0
    %244 = vmatmul.mubr.f32.gmra.mrb[0].mxu0 %v106
    %v245 = vpop.f32.mrb[0].mxu0
    %v246 = vadd.f32 %v63, %v245
    %v247 = vpop.f32.mrb[0].mxu0
    %248 = vmatprep.mubr.f32.mxu0 0.0
    %249 = vmatmul.mubr.f32.gmra.mrb[0].mxu0 %v109
    %v250 = vpop.f32.mrb[0].mxu0
    %v251 = vadd.f32 %v63, %v250
    %v252 = vpop.f32.mrb[0].mxu0
    %253 = vmatprep.mubr.f32.mxu0 0.0
    %254 = vmatmul.mubr.f32.gmra.mrb[0].mxu0 %v112
    %v255 = vpop.f32.mrb[0].mxu0
    %v256 = vadd.f32 %v63, %v255
    %v257 = vpop.f32.mrb[0].mxu0
    %258 = vdwg.mxu0
    %v259 = vmax.f32 %v181, 0.0
    %v260 = vmax.f32 %v186, 0.0
    %v261 = vmax.f32 %v191, 0.0
    %v262 = vmax.f32 %v196, 0.0
    %v263 = vmax.f32 %v201, 0.0
    %v264 = vmax.f32 %v206, 0.0
    %v265 = vmax.f32 %v211, 0.0
    %v266 = vmax.f32 %v216, 0.0
    %v267 = vmax.f32 %v221, 0.0
    %v268 = vmax.f32 %v226, 0.0
    %v269 = vmax.f32 %v231, 0.0
    %v270 = vmax.f32 %v236, 0.0
    %v271 = vmax.f32 %v241, 0.0
    %v272 = vmax.f32 %v246, 0.0
    %v273 = vmax.f32 %v251, 0.0
    %v274 = vmax.f32 %v256, 0.0
    %v275 = vadd.f32 %v259, %v260
    %v276 = vrot.slane %v275, 4
    %v277 = vadd.f32 %v275, %v276
    %v278 = vrot.slane %v277, 2
    %v279 = vadd.f32 %v277, %v278
    %v280 = vrot.slane %v279, 1
    %v281 = vadd.f32 %v279, %v280
    %v282 = vadd.f32 %v261, %v262
    %v283 = vrot.slane %v282, 4
    %v284 = vadd.f32 %v282, %v283
    %v285 = vrot.slane %v284, 2
    %v286 = vadd.f32 %v284, %v285
    %v287 = vrot.slane %v286, 1
    %v288 = vadd.f32 %v286, %v287
    %v289 = vadd.f32 %v263, %v264
    %v290 = vrot.slane %v289, 4
    %v291 = vadd.f32 %v289, %v290
    %v292 = vrot.slane %v291, 2
    %v293 = vadd.f32 %v291, %v292
    %v294 = vrot.slane %v293, 1
    %v295 = vadd.f32 %v293, %v294
    %v296 = vadd.f32 %v265, %v266
    %v297 = vrot.slane %v296, 4
    %v298 = vadd.f32 %v296, %v297
    %v299 = vrot.slane %v298, 2
    %v300 = vadd.f32 %v298, %v299
    %v301 = vrot.slane %v300, 1
    %v302 = vadd.f32 %v300, %v301
    %v303 = vadd.f32 %v267, %v268
    %v304 = vrot.slane %v303, 4
    %v305 = vadd.f32 %v303, %v304
    %v306 = vrot.slane %v305, 2
    %v307 = vadd.f32 %v305, %v306
    %v308 = vrot.slane %v307, 1
    %v309 = vadd.f32 %v307, %v308
    %v310 = vadd.f32 %v269, %v270
    %v311 = vrot.slane %v310, 4
    %v312 = vadd.f32 %v310, %v311
    %v313 = vrot.slane %v312, 2
    %v314 = vadd.f32 %v312, %v313
    %v315 = vrot.slane %v314, 1
    %v316 = vadd.f32 %v314, %v315
    %v317 = vadd.f32 %v271, %v272
    %v318 = vrot.slane %v317, 4
    %v319 = vadd.f32 %v317, %v318
    %v320 = vrot.slane %v319, 2
    %v321 = vadd.f32 %v319, %v320
    %v322 = vrot.slane %v321, 1
    %v323 = vadd.f32 %v321, %v322
    %v324 = vadd.f32 %v273, %v274
    %v325 = vrot.slane %v324, 4
    %v326 = vadd.f32 %v324, %v325
    %v327 = vrot.slane %v326, 2
    %v328 = vadd.f32 %v326, %v327
    %v329 = vrot.slane %v328, 1
    %v330 = vadd.f32 %v328, %v329
    %v331 = vld [vmem:[%s1] sm:$0xff]
    %v332 = vld [vmem:[%s1 + $0x8] sm:$0xff]
    %v333 = vld [vmem:[%s1 + $0x10] sm:$0xff]
    %v334 = vld [vmem:[%s1 + $0x18] sm:$0xff]
    %v335 = vld [vmem:[%s1 + $0x20] sm:$0xff]
    %v336 = vld [vmem:[%s1 + $0x28] sm:$0xff]
    %v337 = vld [vmem:[%s1 + $0x30] sm:$0xff]
    %v338 = vld [vmem:[%s1 + $0x38] sm:$0xff]
    %v339 = vsel %vm65, %v331, 0.0
    %v340 = vrot.slane %v339, 4
    %v341 = vadd.f32 %v339, %v340
    %v342 = vrot.slane %v341, 2
    %v343 = vadd.f32 %v341, %v342
    %v344 = vrot.slane %v343, 1
    %v345 = vadd.f32 %v343, %v344
    %v346 = vsel %vm65, %v332, 0.0
    %v347 = vrot.slane %v346, 4
    %v348 = vadd.f32 %v346, %v347
    %v349 = vrot.slane %v348, 2
    %v350 = vadd.f32 %v348, %v349
    %v351 = vrot.slane %v350, 1
    %v352 = vadd.f32 %v350, %v351
    %v353 = vsel %vm65, %v333, 0.0
    %v354 = vrot.slane %v353, 4
    %v355 = vadd.f32 %v353, %v354
    %v356 = vrot.slane %v355, 2
    %v357 = vadd.f32 %v355, %v356
    %v358 = vrot.slane %v357, 1
    %v359 = vadd.f32 %v357, %v358
    %v360 = vsel %vm65, %v334, 0.0
    %v361 = vrot.slane %v360, 4
    %v362 = vadd.f32 %v360, %v361
    %v363 = vrot.slane %v362, 2
    %v364 = vadd.f32 %v362, %v363
    %v365 = vrot.slane %v364, 1
    %v366 = vadd.f32 %v364, %v365
    %v367 = vsel %vm65, %v335, 0.0
    %v368 = vrot.slane %v367, 4
    %v369 = vadd.f32 %v367, %v368
    %v370 = vrot.slane %v369, 2
    %v371 = vadd.f32 %v369, %v370
    %v372 = vrot.slane %v371, 1
    %v373 = vadd.f32 %v371, %v372
    %v374 = vsel %vm65, %v336, 0.0
    %v375 = vrot.slane %v374, 4
    %v376 = vadd.f32 %v374, %v375
    %v377 = vrot.slane %v376, 2
    %v378 = vadd.f32 %v376, %v377
    %v379 = vrot.slane %v378, 1
    %v380 = vadd.f32 %v378, %v379
    %v381 = vsel %vm65, %v337, 0.0
    %v382 = vrot.slane %v381, 4
    %v383 = vadd.f32 %v381, %v382
    %v384 = vrot.slane %v383, 2
    %v385 = vadd.f32 %v383, %v384
    %v386 = vrot.slane %v385, 1
    %v387 = vadd.f32 %v385, %v386
    %v388 = vsel %vm65, %v338, 0.0
    %v389 = vrot.slane %v388, 4
    %v390 = vadd.f32 %v388, %v389
    %v391 = vrot.slane %v390, 2
    %v392 = vadd.f32 %v390, %v391
    %v393 = vrot.slane %v392, 1
    %v394 = vadd.f32 %v392, %v393
    %v395 = vld [vmem:[%s4] sm:$0xff]
    %v396 = vld [vmem:[%s5] sm:$0xff]
    %v397 = vld [vmem:[%s5 + $0x8] sm:$0xff]
    %v398 = vld [vmem:[%s5 + $0x10] sm:$0xff]
    %v399 = vld [vmem:[%s5 + $0x18] sm:$0xff]
    %v400 = vld [vmem:[%s5 + $0x20] sm:$0xff]
    %v401 = vld [vmem:[%s5 + $0x28] sm:$0xff]
    %v402 = vld [vmem:[%s5 + $0x30] sm:$0xff]
    %v403 = vld [vmem:[%s5 + $0x38] sm:$0xff]
    %v404 = vld [vmem:[%s5 + $0x40] sm:$0xff]
    %v405 = vld [vmem:[%s5 + $0x48] sm:$0xff]
    %v406 = vld [vmem:[%s5 + $0x50] sm:$0xff]
    %v407 = vld [vmem:[%s5 + $0x58] sm:$0xff]
    %v408 = vld [vmem:[%s5 + $0x60] sm:$0xff]
    %v409 = vld [vmem:[%s5 + $0x68] sm:$0xff]
    %v410 = vld [vmem:[%s5 + $0x70] sm:$0xff]
    %v411 = vld [vmem:[%s5 + $0x78] sm:$0xff]
    %vm420 = vcmask 1041409
    %v421 = vsel %vm420, %v288, %v281
    %vm422 = vcmask 1042434
    %v423 = vsel %vm422, %v295, %v421
    %vm424 = vcmask 1043459
    %v425 = vsel %vm424, %v302, %v423
    %vm426 = vcmask 1044484
    %v427 = vsel %vm426, %v309, %v425
    %vm428 = vcmask 1045509
    %v429 = vsel %vm428, %v316, %v427
    %vm430 = vcmask 1046534
    %v431 = vsel %vm430, %v323, %v429
    %vm432 = vcmask 1047559
    %v433 = vsel %vm432, %v330, %v431
    %435 = vmatprep.subr.mxu0 0.0
    %436 = vmatpush1.msra.mxu0 %v396
    %437 = vmatprep.subr.mxu0 0.0
    %438 = vmatpush1.msra.mxu0 %v397
    %439 = vmatprep.subr.mxu0 0.0
    %440 = vmatpush1.msra.mxu0 %v398
    %441 = vmatprep.subr.mxu0 0.0
    %442 = vmatpush1.msra.mxu0 %v399
    %443 = vmatprep.subr.mxu0 0.0
    %444 = vmatpush1.msra.mxu0 %v400
    %445 = vmatprep.subr.mxu0 0.0
    %446 = vmatpush1.msra.mxu0 %v401
    %447 = vmatprep.subr.mxu0 0.0
    %448 = vmatpush1.msra.mxu0 %v402
    %449 = vmatprep.subr.mxu0 0.0
    %450 = vmatpush1.msra.mxu0 %v403
    %451 = vmatprep.subr.mxu0 0.0
    %452 = vmatpush1.msra.mxu0 %v404
    %453 = vmatprep.subr.mxu0 0.0
    %454 = vmatpush1.msra.mxu0 %v405
    %455 = vmatprep.subr.mxu0 0.0
    %456 = vmatpush1.msra.mxu0 %v406
    %457 = vmatprep.subr.mxu0 0.0
    %458 = vmatpush1.msra.mxu0 %v407
    %459 = vmatprep.subr.mxu0 0.0
    %460 = vmatpush1.msra.mxu0 %v408
    %461 = vmatprep.subr.mxu0 0.0
    %462 = vmatpush1.msra.mxu0 %v409
    %463 = vmatprep.subr.mxu0 0.0
    %464 = vmatpush1.msra.mxu0 %v410
    %465 = vmatprep.subr.mxu0 0.0
    %466 = vmatpush1.msra.mxu0 %v411
    %467 = vmatprep.subr.mxu0 0.0
    %468 = vmatpush1.msra.mxu0 0.0
    %469 = vmatprep.subr.mxu0 0.0
    %470 = vmatpush1.msra.mxu0 0.0
    %471 = vmatprep.subr.mxu0 0.0
    %472 = vmatpush1.msra.mxu0 0.0
    %473 = vmatprep.subr.mxu0 0.0
    %474 = vmatpush1.msra.mxu0 0.0
    %475 = vmatprep.subr.mxu0 0.0
    %476 = vmatpush1.msra.mxu0 0.0
    %477 = vmatprep.subr.mxu0 0.0
    %478 = vmatpush1.msra.mxu0 0.0
    %479 = vmatprep.subr.mxu0 0.0
    %480 = vmatpush1.msra.mxu0 0.0
    %481 = vmatprep.subr.mxu0 0.0
    %482 = vmatpush1.msra.mxu0 0.0
    %483 = vmatprep.subr.mxu0 0.0
    %484 = vmatpush1.msra.mxu0 0.0
    %485 = vmatprep.subr.mxu0 0.0
    %486 = vmatpush1.msra.mxu0 0.0
    %487 = vmatprep.subr.mxu0 0.0
    %488 = vmatpush1.msra.mxu0 0.0
    %489 = vmatprep.subr.mxu0 0.0
    %490 = vmatpush1.msra.mxu0 0.0
    %491 = vmatprep.subr.mxu0 0.0
    %492 = vmatpush1.msra.mxu0 0.0
    %493 = vmatprep.subr.mxu0 0.0
    %494 = vmatpush1.msra.mxu0 0.0
    %495 = vmatprep.subr.mxu0 0.0
    %496 = vmatpush1.msra.mxu0 0.0
    %497 = vmatprep.subr.mxu0 0.0
    %498 = vmatpush1.msra.mxu0 0.0
    %499 = vmatprep.mubr.f32.mxu0 0.0
    %500 = vmatmul.mubr.f32.gmra.mrb[0].mxu0 %v433
    %v501 = vpop.f32.mrb[0].mxu0
    %v502 = vadd.f32 0.0, %v501
    %v503 = vpop.f32.mrb[0].mxu0
    %504 = vdwg.mxu0
    %v513 = vsel %vm420, %v352, %v345
    %v514 = vsel %vm422, %v359, %v513
    %v515 = vsel %vm424, %v366, %v514
    %v516 = vsel %vm426, %v373, %v515
    %v517 = vsel %vm428, %v380, %v516
    %v518 = vsel %vm430, %v387, %v517
    %v519 = vsel %vm432, %v394, %v518
    %v520 = vsel %vm65, %v519, 0
    %522 = vmatprep.subr.mxu0 0.0
    %523 = vmatpush1.msra.mxu0 %v395
    %524 = vmatprep.subr.mxu0 0.0
    %525 = vmatpush1.msra.mxu0 0.0
    %526 = vmatprep.subr.mxu0 0.0
    %527 = vmatpush1.msra.mxu0 0.0
    %528 = vmatprep.subr.mxu0 0.0
    %529 = vmatpush1.msra.mxu0 0.0
    %530 = vmatprep.subr.mxu0 0.0
    %531 = vmatpush1.msra.mxu0 0.0
    %532 = vmatprep.subr.mxu0 0.0
    %533 = vmatpush1.msra.mxu0 0.0
    %534 = vmatprep.subr.mxu0 0.0
    %535 = vmatpush1.msra.mxu0 0.0
    %536 = vmatprep.subr.mxu0 0.0
    %537 = vmatpush1.msra.mxu0 0.0
    %538 = vmatprep.subr.mxu0 0.0
    %539 = vmatpush1.msra.mxu0 0.0
    %540 = vmatprep.subr.mxu0 0.0
    %541 = vmatpush1.msra.mxu0 0.0
    %542 = vmatprep.subr.mxu0 0.0
    %543 = vmatpush1.msra.mxu0 0.0
    %544 = vmatprep.subr.mxu0 0.0
    %545 = vmatpush1.msra.mxu0 0.0
    %546 = vmatprep.subr.mxu0 0.0
    %547 = vmatpush1.msra.mxu0 0.0
    %548 = vmatprep.subr.mxu0 0.0
    %549 = vmatpush1.msra.mxu0 0.0
    %550 = vmatprep.subr.mxu0 0.0
    %551 = vmatpush1.msra.mxu0 0.0
    %552 = vmatprep.subr.mxu0 0.0
    %553 = vmatpush1.msra.mxu0 0.0
    %554 = vmatprep.subr.mxu0 0.0
    %555 = vmatpush1.msra.mxu0 0.0
    %556 = vmatprep.subr.mxu0 0.0
    %557 = vmatpush1.msra.mxu0 0.0
    %558 = vmatprep.subr.mxu0 0.0
    %559 = vmatpush1.msra.mxu0 0.0
    %560 = vmatprep.subr.mxu0 0.0
    %561 = vmatpush1.msra.mxu0 0.0
    %562 = vmatprep.subr.mxu0 0.0
    %563 = vmatpush1.msra.mxu0 0.0
    %564 = vmatprep.subr.mxu0 0.0
    %565 = vmatpush1.msra.mxu0 0.0
    %566 = vmatprep.subr.mxu0 0.0
    %567 = vmatpush1.msra.mxu0 0.0
    %568 = vmatprep.subr.mxu0 0.0
    %569 = vmatpush1.msra.mxu0 0.0
    %570 = vmatprep.subr.mxu0 0.0
    %571 = vmatpush1.msra.mxu0 0.0
    %572 = vmatprep.subr.mxu0 0.0
    %573 = vmatpush1.msra.mxu0 0.0
    %574 = vmatprep.subr.mxu0 0.0
    %575 = vmatpush1.msra.mxu0 0.0
    %576 = vmatprep.subr.mxu0 0.0
    %577 = vmatpush1.msra.mxu0 0.0
    %578 = vmatprep.subr.mxu0 0.0
    %579 = vmatpush1.msra.mxu0 0.0
    %580 = vmatprep.subr.mxu0 0.0
    %581 = vmatpush1.msra.mxu0 0.0
    %582 = vmatprep.subr.mxu0 0.0
    %583 = vmatpush1.msra.mxu0 0.0
    %584 = vmatprep.subr.mxu0 0.0
    %585 = vmatpush1.msra.mxu0 0.0
    %586 = vmatprep.mubr.f32.mxu0 0.0
    %587 = vmatmul.mubr.f32.gmra.mrb[0].mxu0 %v520
    %v588 = vpop.f32.mrb[0].mxu0
    %v589 = vadd.f32 %v502, %v588
    %v590 = vpop.f32.mrb[0].mxu0
    %591 = vdwg.mxu0
    %592 = vst [vmem:[#allocation5] sm:$0xff] %v589
    %v593 = vld [vmem:[#allocation2] sm:$0xff]
    %v595 = vsel %vm65, %v331, 0
    %v598 = vsel %vm65, %v332, 0
    %v601 = vsel %vm65, %v333, 0
    %v604 = vsel %vm65, %v334, 0
    %v607 = vsel %vm65, %v335, 0
    %v610 = vsel %vm65, %v336, 0
    %v613 = vsel %vm65, %v337, 0
    %v616 = vsel %vm65, %v338, 0
    %618 = vmatprep.subr.mxu0 0.0
    %619 = vmatpush1.msra.mxu0 %v593
    %620 = vmatprep.subr.mxu0 0.0
    %621 = vmatpush1.msra.mxu0 0.0
    %622 = vmatprep.subr.mxu0 0.0
    %623 = vmatpush1.msra.mxu0 0.0
    %624 = vmatprep.subr.mxu0 0.0
    %625 = vmatpush1.msra.mxu0 0.0
    %626 = vmatprep.subr.mxu0 0.0
    %627 = vmatpush1.msra.mxu0 0.0
    %628 = vmatprep.subr.mxu0 0.0
    %629 = vmatpush1.msra.mxu0 0.0
    %630 = vmatprep.subr.mxu0 0.0
    %631 = vmatpush1.msra.mxu0 0.0
    %632 = vmatprep.subr.mxu0 0.0
    %633 = vmatpush1.msra.mxu0 0.0
    %634 = vmatprep.subr.mxu0 0.0
    %635 = vmatpush1.msra.mxu0 0.0
    %636 = vmatprep.subr.mxu0 0.0
    %637 = vmatpush1.msra.mxu0 0.0
    %638 = vmatprep.subr.mxu0 0.0
    %639 = vmatpush1.msra.mxu0 0.0
    %640 = vmatprep.subr.mxu0 0.0
    %641 = vmatpush1.msra.mxu0 0.0
    %642 = vmatprep.subr.mxu0 0.0
    %643 = vmatpush1.msra.mxu0 0.0
    %644 = vmatprep.subr.mxu0 0.0
    %645 = vmatpush1.msra.mxu0 0.0
    %646 = vmatprep.subr.mxu0 0.0
    %647 = vmatpush1.msra.mxu0 0.0
    %648 = vmatprep.subr.mxu0 0.0
    %649 = vmatpush1.msra.mxu0 0.0
    %650 = vmatprep.subr.mxu0 0.0
    %651 = vmatpush1.msra.mxu0 0.0
    %652 = vmatprep.subr.mxu0 0.0
    %653 = vmatpush1.msra.mxu0 0.0
    %654 = vmatprep.subr.mxu0 0.0
    %655 = vmatpush1.msra.mxu0 0.0
    %656 = vmatprep.subr.mxu0 0.0
    %657 = vmatpush1.msra.mxu0 0.0
    %658 = vmatprep.subr.mxu0 0.0
    %659 = vmatpush1.msra.mxu0 0.0
    %660 = vmatprep.subr.mxu0 0.0
    %661 = vmatpush1.msra.mxu0 0.0
    %662 = vmatprep.subr.mxu0 0.0
    %663 = vmatpush1.msra.mxu0 0.0
    %664 = vmatprep.subr.mxu0 0.0
    %665 = vmatpush1.msra.mxu0 0.0
    %666 = vmatprep.subr.mxu0 0.0
    %667 = vmatpush1.msra.mxu0 0.0
    %668 = vmatprep.subr.mxu0 0.0
    %669 = vmatpush1.msra.mxu0 0.0
    %670 = vmatprep.subr.mxu0 0.0
    %671 = vmatpush1.msra.mxu0 0.0
    %672 = vmatprep.subr.mxu0 0.0
    %673 = vmatpush1.msra.mxu0 0.0
    %674 = vmatprep.subr.mxu0 0.0
    %675 = vmatpush1.msra.mxu0 0.0
    %676 = vmatprep.subr.mxu0 0.0
    %677 = vmatpush1.msra.mxu0 0.0
    %678 = vmatprep.subr.mxu0 0.0
    %679 = vmatpush1.msra.mxu0 0.0
    %680 = vmatprep.subr.mxu0 0.0
    %681 = vmatpush1.msra.mxu0 0.0
    %682 = vmatprep.mubr.f32.mxu0 0.0
    %683 = vmatmul.mubr.f32.gmra.mrb[0].mxu0 %v595
    %v684 = vpop.f32.mrb[0].mxu0
    %v685 = vadd.f32 0.0, %v684
    %v686 = vpop.f32.mrb[0].mxu0
    %687 = vmatprep.mubr.f32.mxu0 0.0
    %688 = vmatmul.mubr.f32.gmra.mrb[0].mxu0 %v598
    %v689 = vpop.f32.mrb[0].mxu0
    %v690 = vadd.f32 0.0, %v689
    %v691 = vpop.f32.mrb[0].mxu0
    %692 = vmatprep.mubr.f32.mxu0 0.0
    %693 = vmatmul.mubr.f32.gmra.mrb[0].mxu0 %v601
    %v694 = vpop.f32.mrb[0].mxu0
    %v695 = vadd.f32 0.0, %v694
    %v696 = vpop.f32.mrb[0].mxu0
    %697 = vmatprep.mubr.f32.mxu0 0.0
    %698 = vmatmul.mubr.f32.gmra.mrb[0].mxu0 %v604
    %v699 = vpop.f32.mrb[0].mxu0
    %v700 = vadd.f32 0.0, %v699
    %v701 = vpop.f32.mrb[0].mxu0
    %702 = vmatprep.mubr.f32.mxu0 0.0
    %703 = vmatmul.mubr.f32.gmra.mrb[0].mxu0 %v607
    %v704 = vpop.f32.mrb[0].mxu0
    %v705 = vadd.f32 0.0, %v704
    %v706 = vpop.f32.mrb[0].mxu0
    %707 = vmatprep.mubr.f32.mxu0 0.0
    %708 = vmatmul.mubr.f32.gmra.mrb[0].mxu0 %v610
    %v709 = vpop.f32.mrb[0].mxu0
    %v710 = vadd.f32 0.0, %v709
    %v711 = vpop.f32.mrb[0].mxu0
    %712 = vmatprep.mubr.f32.mxu0 0.0
    %713 = vmatmul.mubr.f32.gmra.mrb[0].mxu0 %v613
    %v714 = vpop.f32.mrb[0].mxu0
    %v715 = vadd.f32 0.0, %v714
    %v716 = vpop.f32.mrb[0].mxu0
    %717 = vmatprep.mubr.f32.mxu0 0.0
    %718 = vmatmul.mubr.f32.gmra.mrb[0].mxu0 %v616
    %v719 = vpop.f32.mrb[0].mxu0
    %v720 = vadd.f32 0.0, %v719
    %v721 = vpop.f32.mrb[0].mxu0
    %722 = vdwg.mxu0
    %723 = vst [vmem:[%s8] sm:$0xff] %v685
    %724 = vst [vmem:[%s8 + $0x8] sm:$0xff] %v690
    %725 = vst [vmem:[%s8 + $0x10] sm:$0xff] %v695
    %726 = vst [vmem:[%s8 + $0x18] sm:$0xff] %v700
    %727 = vst [vmem:[%s8 + $0x20] sm:$0xff] %v705
    %728 = vst [vmem:[%s8 + $0x28] sm:$0xff] %v710
    %729 = vst [vmem:[%s8 + $0x30] sm:$0xff] %v715
    %730 = vst [vmem:[%s8 + $0x38] sm:$0xff] %v720
    // Predicated region
    $region34: #{graphormer_ion_cnn_forward.1} parent=1 // pred_check
      _
    $region35: #{graphormer_ion_cnn_forward.1} parent=1 // pred_check_branch
      %732 = sbr.rel (0) target = $region37
    $region36: #{graphormer_ion_cnn_forward.1} parent=1 // pred_region
      %s734 = ssub.s32 128, 128
      %735 = vsyncadd [#allocation4], %s734
      %s737 = sshll.u32 [#allocation5], 4
      %s738 = int_to_ptr.vmem [resolvable:$true] %s737
      %740 = dma.vmem_to_hbm [thread:$0]  %s738, 128, %s7, [#allocation4]
    $region37: #{graphormer_ion_cnn_forward.1} parent=1 // pred_fallthru
      _
    // Predicated region
    $region38: #{graphormer_ion_cnn_forward.1} parent=1 // pred_check
      _
    $region39: #{graphormer_ion_cnn_forward.1} parent=1 // pred_check_branch
      %742 = sbr.rel (0) target = $region41
    $region40: #{graphormer_ion_cnn_forward.1} parent=1 // pred_region
      _
    $region41: #{graphormer_ion_cnn_forward.1} parent=1 // pred_fallthru
      _
    // Predicated region
    $region42: #{graphormer_ion_cnn_forward.1} parent=1 // pred_check
      _
    $region43: #{graphormer_ion_cnn_forward.1} parent=1 // pred_check_branch
      %744 = sbr.rel (0) target = $region45
    $region44: #{graphormer_ion_cnn_forward.1} parent=1 // pred_region
      %745 = dma.done [#allocation4], 128
    $region45: #{graphormer_ion_cnn_forward.1} parent=1 // pred_fallthru
      _
    // Predicated region
    $region46: #{graphormer_ion_cnn_forward.1} parent=1 // pred_check
      _
    $region47: #{graphormer_ion_cnn_forward.1} parent=1 // pred_check_branch
      %747 = sbr.rel (0) target = $region49
    $region48: #{graphormer_ion_cnn_forward.1} parent=1 // pred_region
      _
    $region49: #{graphormer_ion_cnn_forward.1} parent=1 // pred_fallthru
      _
    %748 = vsyncpa [#allocation3], 1
    %749 = vsyncpa [#allocation4], 1

</llo_original>
